<compile_context>
chip_gen: v7x
topology: tpu7x:2x2x1
jax: 0.10.0
libtpu: 0.0.40
codegen_flags: <defaults>
</compile_context>

<pallas_src>
import functools
import math

import jax
import jax.numpy as jnp
from jax import lax
from jax.experimental import pallas as pl
from jax.experimental.pallas import tpu as pltpu


def _round_up(x: int, m: int) -> int:
    return ((x + m - 1) // m) * m


def _gated_fusion_kernel(v_ref, a_ref, wv_ref, wa_ref, b_ref, out_ref,
                         *, gate_activation: str, n_valid: int):
    n_pad = out_ref.shape[-1]

    # Single fused GEMM over the concatenated output axis -> (tm, 2*Npad) f32.
    acc = jnp.dot(v_ref[...], wv_ref[...], preferred_element_type=jnp.float32)
    acc = acc + jnp.dot(a_ref[...], wa_ref[...], preferred_element_type=jnp.float32)
    acc = acc + b_ref[...]                                   # bias add in f32

    fused = acc[:, :n_pad]          # lane-aligned split (n_pad % 128 == 0)
    logits = acc[:, n_pad:]

    if gate_activation == "sigmoid":
        gate = jax.nn.sigmoid(logits)
    elif gate_activation == "tanh":
        gate = jnp.tanh(logits)
    elif gate_activation == "softmax":
        if n_valid != n_pad:
            # Mask the zero-padded lanes out of the normalization.
            lane = lax.broadcasted_iota(jnp.int32, logits.shape, 1)
            logits = jnp.where(lane < n_valid, logits, -jnp.inf)
        m = jnp.max(logits, axis=-1, keepdims=True)
        e = jnp.exp(logits - m)
        s = jnp.sum(e, axis=-1, keepdims=True)
        gate = e * pl.reciprocal(s, approx=True)             # EUP slot
    else:
        raise ValueError(f"Unsupported gate_activation: {gate_activation}")

    out_ref[...] = (fused * gate).astype(out_ref.dtype)


def gated_fusion(video_features, audio_features, params,
                 gate_activation: str = "sigmoid", tm: int = 256,
                 compute_dtype=None):
    """Gated fusion of video/audio features.

    video_features: (B, S, Dv), audio_features: (B, S, Da)
    params: dict with w_fc (Dv+Da, d_model), b_fc (d_model,),
                      w_gate (Dv+Da, d_model), b_gate (d_model,)
    returns: (B, S, d_model)
    """
    if gate_activation not in ("sigmoid", "tanh", "softmax"):
        raise ValueError(f"Unsupported gate_activation: {gate_activation}")

    B, S, Dv = video_features.shape
    Da = audio_features.shape[-1]
    K = Dv + Da
    N = params["w_fc"].shape[1]
    out_dtype = video_features.dtype

    cdtype = jnp.dtype(compute_dtype) if compute_dtype is not None \
        else jnp.dtype(video_features.dtype)
    # Sublane packing: f32 -> 8 rows/vreg, bf16 -> 16, int8/fp8 -> 32.
    sub = 8 * (4 // max(1, cdtype.itemsize))

    M = B * S
    tm_eff = max(sub, min(_round_up(tm, sub), _round_up(M, sub)))
    M_pad = _round_up(M, tm_eff)
    N_pad = _round_up(N, 128)

    # Flatten rows; pad row count to the tile size (no HBM concat of features).
    v2 = video_features.reshape(M, Dv)
    a2 = audio_features.reshape(M, Da)
    if M_pad != M:
        v2 = jnp.pad(v2, ((0, M_pad - M), (0, 0)))
        a2 = jnp.pad(a2, ((0, M_pad - M), (0, 0)))

    # Fuse [W_fc | W_gate] along the output axis, zero-padded to lane-dense N.
    def _pad_w(w):
        return jnp.pad(w, ((0, 0), (0, N_pad - N))) if N_pad != N else w

    def _pad_b(b):
        return jnp.pad(b, (0, N_pad - N)) if N_pad != N else b

    w_big = jnp.concatenate([_pad_w(params["w_fc"]), _pad_w(params["w_gate"])],
                            axis=1)                           # (K, 2*N_pad)
    w_v = w_big[:Dv]                                          # (Dv, 2*N_pad)
    w_a = w_big[Dv:]                                          # (Da, 2*N_pad)
    b_big = jnp.concatenate([_pad_b(params["b_fc"]), _pad_b(params["b_gate"])])
    b_big = b_big.astype(jnp.float32).reshape(1, 2 * N_pad)   # bias stays f32

    if compute_dtype is not None:
        v2 = v2.astype(cdtype)
        a2 = a2.astype(cdtype)
        w_v = w_v.astype(cdtype)
        w_a = w_a.astype(cdtype)

    kernel = functools.partial(_gated_fusion_kernel,
                               gate_activation=gate_activation, n_valid=N)

    grid = (M_pad // tm_eff,)
    out_isz = jnp.dtype(out_dtype).itemsize

    # VMEM budget: double-buffered blocks + f32 accumulator + headroom.
    block_bytes = (tm_eff * Dv * v2.dtype.itemsize
                   + tm_eff * Da * a2.dtype.itemsize
                   + Dv * 2 * N_pad * w_v.dtype.itemsize
                   + Da * 2 * N_pad * w_a.dtype.itemsize
                   + 2 * N_pad * 4
                   + tm_eff * N_pad * out_isz)
    vmem_need = 2 * block_bytes + tm_eff * 2 * N_pad * 4 + (4 << 20)
    if vmem_need > (16 << 20):
        compiler_params = pltpu.CompilerParams(
            dimension_semantics=("parallel",),
            vmem_limit_bytes=int(min(64 << 20, vmem_need)))
    else:
        compiler_params = pltpu.CompilerParams(
            dimension_semantics=("parallel",))

    cost = pl.CostEstimate(
        flops=int(2 * M_pad * K * 2 * N_pad + 4 * M_pad * N_pad),
        transcendentals=int(M_pad * N_pad),
        bytes_accessed=int(v2.nbytes + a2.nbytes + w_v.nbytes + w_a.nbytes
                           + b_big.nbytes + M_pad * N_pad * out_isz),
    )

    out = pl.pallas_call(
        kernel,
        out_shape=jax.ShapeDtypeStruct((M_pad, N_pad), out_dtype),
        grid_spec=pltpu.PrefetchScalarGridSpec(
            num_scalar_prefetch=0,
            grid=grid,
            in_specs=[
                pl.BlockSpec((tm_eff, Dv), lambda i: (i, 0)),       # video rows
                pl.BlockSpec((tm_eff, Da), lambda i: (i, 0)),       # audio rows
                pl.BlockSpec((Dv, 2 * N_pad), lambda i: (0, 0)),    # W[:Dv] fused
                pl.BlockSpec((Da, 2 * N_pad), lambda i: (0, 0)),    # W[Dv:] fused
                pl.BlockSpec((1, 2 * N_pad), lambda i: (0, 0)),     # [b_fc|b_gate]
            ],
            out_specs=pl.BlockSpec((tm_eff, N_pad), lambda i: (i, 0)),
        ),
        compiler_params=compiler_params,
        cost_estimate=cost,
    )(v2, a2, w_v, w_a, b_big)

    return out[:M, :N].reshape(B, S, N)


def init_params(key, video_dim, audio_dim, d_model, dtype=jnp.float32):
    """Deterministic PyTorch-Linear-style init (uniform(-1/sqrt(fan_in), ...))."""
    fan_in = video_dim + audio_dim
    bound = 1.0 / math.sqrt(fan_in)
    k1, k2, k3, k4 = jax.random.split(key, 4)
    return {
        # stored as (in_features, out_features) == W.T relative to torch
        "w_fc": jax.random.uniform(k1, (fan_in, d_model), dtype, -bound, bound),
        "b_fc": jax.random.uniform(k2, (d_model,), dtype, -bound, bound),
        "w_gate": jax.random.uniform(k3, (fan_in, d_model), dtype, -bound, bound),
        "b_gate": jax.random.uniform(k4, (d_model,), dtype, -bound, bound),
    }


def _reference(video, audio, params, gate_activation="sigmoid"):
    combined = jnp.concatenate([video, audio], axis=-1)
    fused = combined @ params["w_fc"] + params["b_fc"]
    logits = combined @ params["w_gate"] + params["b_gate"]
    if gate_activation == "sigmoid":
        gate = jax.nn.sigmoid(logits)
    elif gate_activation == "tanh":
        gate = jnp.tanh(logits)
    else:
        gate = jax.nn.softmax(logits, axis=-1)
    return fused * gate


if __name__ == "__main__":
    key = jax.random.PRNGKey(0)
    k_v, k_a, k_p = jax.random.split(key, 3)

    batch, seq = 2, 8
    video_dim, audio_dim, d_model = 32, 32, 32

    video = jax.random.normal(k_v, (batch, seq, video_dim), jnp.float32)
    audio = jax.random.normal(k_a, (batch, seq, audio_dim), jnp.float32)
    params = init_params(k_p, video_dim, audio_dim, d_model)

    # sigmoid gate (default) — tight tolerance vs pure-JAX reference.
    out = gated_fusion(video, audio, params, gate_activation="sigmoid")
    out = jax.block_until_ready(out)
    ref = _reference(video, audio, params, "sigmoid")
    assert out.shape == (batch, seq, d_model)
    assert jnp.allclose(out, ref, atol=1e-5, rtol=1e-5)

    # tanh gate.
    out_t = jax.block_until_ready(
        gated_fusion(video, audio, params, gate_activation="tanh"))
    assert jnp.allclose(out_t, _reference(video, audio, params, "tanh"),
                        atol=1e-5, rtol=1e-5)

    # softmax gate (padded lanes masked; approx reciprocal -> looser tol).
    out_s = jax.block_until_ready(
        gated_fusion(video, audio, params, gate_activation="softmax"))
    assert jnp.allclose(out_s, _reference(video, audio, params, "softmax"),
                        atol=1e-2, rtol=1e-2)

    # bf16 compute path (weights/activations bf16, f32 accumulate).
    out_bf = jax.block_until_ready(
        gated_fusion(video, audio, params, gate_activation="sigmoid",
                     compute_dtype=jnp.bfloat16))
    assert jnp.allclose(out_bf, ref, atol=5e-2, rtol=5e-2)

    print("KERNEL_OK")
</pallas_src>

<mosaic_0001>
module attributes {stable_mosaic.version = 11 : i64} {
  func.func @_gated_fusion_kernel(%arg0: i32, %arg1: memref<16x32xf32, #tpu.memory_space<vmem>>, %arg2: memref<16x32xf32, #tpu.memory_space<vmem>>, %arg3: memref<32x256xf32, #tpu.memory_space<vmem>>, %arg4: memref<32x256xf32, #tpu.memory_space<vmem>>, %arg5: memref<1x256xf32, #tpu.memory_space<vmem>>, %arg6: memref<16x128xf32, #tpu.memory_space<vmem>>) attributes {dimension_semantics = [#tpu.dimension_semantics<parallel>], iteration_bounds = array<i64: 1>, scalar_prefetch = 0 : i64, scratch_operands = 0 : i64, tpu.core_type = #tpu.core_type<tc>, window_params = [{transform_indices = @transform_0, window_bounds = array<i64: 16, 32>}, {transform_indices = @transform_1, window_bounds = array<i64: 16, 32>}, {pipeline_mode = #tpu.pipeline_mode<synchronous>, transform_indices = @transform_2, window_bounds = array<i64: 32, 256>}, {pipeline_mode = #tpu.pipeline_mode<synchronous>, transform_indices = @transform_3, window_bounds = array<i64: 32, 256>}, {pipeline_mode = #tpu.pipeline_mode<synchronous>, transform_indices = @transform_4, window_bounds = array<i64: 1, 256>}, {transform_indices = @transform_5, window_bounds = array<i64: 16, 128>}]} {
    %c0 = arith.constant 0 : index
    %c0_0 = arith.constant 0 : index
    %0 = vector.load %arg1[%c0, %c0_0] : memref<16x32xf32, #tpu.memory_space<vmem>>, vector<16x32xf32>
    %c0_1 = arith.constant 0 : index
    %c0_2 = arith.constant 0 : index
    %1 = vector.load %arg3[%c0_1, %c0_2] : memref<32x256xf32, #tpu.memory_space<vmem>>, vector<32x256xf32>
    %cst = arith.constant dense<0.000000e+00> : vector<16x256xf32>
    %2 = tpu.matmul %0, %1, %cst {dimension_numbers = #tpu.dot_dimension_numbers<[1], [0], [0], [1], [0, 0, 1, 1], [], []>} : vector<16x32xf32>, vector<32x256xf32>, vector<16x256xf32> -> vector<16x256xf32>
    %c0_3 = arith.constant 0 : index
    %c0_4 = arith.constant 0 : index
    %3 = vector.load %arg2[%c0_3, %c0_4] : memref<16x32xf32, #tpu.memory_space<vmem>>, vector<16x32xf32>
    %c0_5 = arith.constant 0 : index
    %c0_6 = arith.constant 0 : index
    %4 = vector.load %arg4[%c0_5, %c0_6] : memref<32x256xf32, #tpu.memory_space<vmem>>, vector<32x256xf32>
    %cst_7 = arith.constant dense<0.000000e+00> : vector<16x256xf32>
    %5 = tpu.matmul %3, %4, %cst_7 {dimension_numbers = #tpu.dot_dimension_numbers<[1], [0], [0], [1], [0, 0, 1, 1], [], []>} : vector<16x32xf32>, vector<32x256xf32>, vector<16x256xf32> -> vector<16x256xf32>
    %6 = arith.addf %2, %5 : vector<16x256xf32>
    %c0_8 = arith.constant 0 : index
    %c0_9 = arith.constant 0 : index
    %7 = vector.load %arg5[%c0_8, %c0_9] : memref<1x256xf32, #tpu.memory_space<vmem>>, vector<1x256xf32>
    %8 = vector.broadcast %7 : vector<1x256xf32> to vector<16x256xf32>
    %9 = arith.addf %6, %8 : vector<16x256xf32>
    %10 = vector.extract_strided_slice %9 {offsets = [0, 0], sizes = [16, 128], strides = [1, 1]} : vector<16x256xf32> to vector<16x128xf32>
    %11 = vector.extract_strided_slice %9 {offsets = [0, 128], sizes = [16, 128], strides = [1, 1]} : vector<16x256xf32> to vector<16x128xf32>
    %12 = arith.negf %11 : vector<16x128xf32>
    %13 = math.exp %12 : vector<16x128xf32>
    %cst_10 = arith.constant 1.000000e+00 : f32
    %14 = vector.broadcast %cst_10 : f32 to vector<16x128xf32>
    %15 = arith.addf %14, %13 : vector<16x128xf32>
    %16 = arith.divf %14, %15 : vector<16x128xf32>
    %17 = arith.mulf %10, %16 : vector<16x128xf32>
    %c0_11 = arith.constant 0 : index
    %c0_12 = arith.constant 0 : index
    %18 = vector.load %arg6[%c0_11, %c0_12] : memref<16x128xf32, #tpu.memory_space<vmem>>, vector<16x128xf32>
    tpu.vector_store %arg6[%c0_11, %c0_12], %17 {strides = array<i32>} : memref<16x128xf32, #tpu.memory_space<vmem>>, vector<16x128xf32>,
    return
  }
  func.func @transform_0(%arg0: i32) -> (i32, i32) {
    %c0_i32 = arith.constant 0 : i32
    %c0_i32_0 = arith.constant 0 : i32
    return %arg0, %c0_i32 : i32, i32
  }
  func.func @transform_1(%arg0: i32) -> (i32, i32) {
    %c0_i32 = arith.constant 0 : i32
    %c0_i32_0 = arith.constant 0 : i32
    return %arg0, %c0_i32 : i32, i32
  }
  func.func @transform_2(%arg0: i32) -> (i32, i32) {
    %c0_i32 = arith.constant 0 : i32
    %c0_i32_0 = arith.constant 0 : i32
    %c0_i32_1 = arith.constant 0 : i32
    return %c0_i32, %c0_i32_0 : i32, i32
  }
  func.func @transform_3(%arg0: i32) -> (i32, i32) {
    %c0_i32 = arith.constant 0 : i32
    %c0_i32_0 = arith.constant 0 : i32
    %c0_i32_1 = arith.constant 0 : i32
    return %c0_i32, %c0_i32_0 : i32, i32
  }
  func.func @transform_4(%arg0: i32) -> (i32, i32) {
    %c0_i32 = arith.constant 0 : i32
    %c0_i32_0 = arith.constant 0 : i32
    %c0_i32_1 = arith.constant 0 : i32
    return %c0_i32, %c0_i32_0 : i32, i32
  }
  func.func @transform_5(%arg0: i32) -> (i32, i32) {
    %c0_i32 = arith.constant 0 : i32
    %c0_i32_0 = arith.constant 0 : i32
    return %arg0, %c0_i32 : i32, i32
  }
}

</mosaic_0001>

<llo_original>
// kernel: tpu_custom_call.1
$region0: #{tpu_custom_call.1}
  #allocation0 [shape = 'u32[]', space=smem, size = 0x4, offset = 0x4, fixed_abs, tag = 'smem constant byte address 0x4 - core index']
  #allocation1 [shape = 'u32[144,128]{1,0:T(1,128)}', space=vmem, size = 0x12000, scoped, tag = 'internal scratch']
  %s0 = inlined_call_operand.hbm [shape: f32[16,32], index: 0, kind: input, shape index: {}]
  %s1 = inlined_call_operand.hbm [shape: f32[16,32], index: 1, kind: input, shape index: {}]
  %s2 = inlined_call_operand.hbm [shape: f32[32,256], index: 2, kind: input, shape index: {}]
  %s3 = inlined_call_operand.hbm [shape: f32[32,256], index: 3, kind: input, shape index: {}]
  %s4 = inlined_call_operand.vmem [shape: f32[1,256], index: 4, kind: input, shape index: {}]
  %s5 = inlined_call_operand.hbm [shape: f32[16,128], index: 5, kind: output, shape index: {}]
  %s6 = sld [smem:[#allocation0]]
  $region46: #{tpu_custom_call.1} parent=0
    _
  %s8 = ssub.s32 1, %s6
  %s9 = scalar_select 0, %s8, %s6
  $region1: #{tpu_custom_call.1} parent=0
    #allocation2 [shape = 'u8[8192]{0}', space=vmem, size = 0x2000, scoped, tag = 'input window, operand 0, single buffered']
    #allocation3 [shape = 's32[1]{0}', space=sflag, size = 0x4, scoped, tag = 'scoped memory for tpu_custom_call.1']
    #allocation4 [shape = 's32[1]{0}', space=sflag, size = 0x4, scoped, tag = 'scoped memory for tpu_custom_call.1']
    #allocation5 [shape = 'u8[8192]{0}', space=vmem, size = 0x2000, scoped, tag = 'input window, operand 1, single buffered']
    #allocation6 [shape = 's32[1]{0}', space=sflag, size = 0x4, scoped, tag = 'scoped memory for tpu_custom_call.1']
    #allocation7 [shape = 'u8[32768]{0}', space=vmem, size = 0x8000, scoped, tag = 'input window, operand 2, single buffered']
    #allocation8 [shape = 'u8[32768]{0}', space=vmem, size = 0x8000, scoped, tag = 'input window, operand 3, single buffered']
    #allocation9 [shape = 's32[1]{0}', space=sflag, size = 0x4, scoped, tag = 'scoped memory for tpu_custom_call.1']
    #allocation10 [shape = 'u8[8192]{0}', space=vmem, size = 0x2000, scoped, tag = 'output window, operand 0, single buffered']
    %10 = vsyncpa [#allocation3], 0
    %11 = vsyncpa [#allocation6], 0
    %12 = vsyncpa [#allocation9], 0
    %13 = vsyncpa [#allocation4], 0
    // Predicated region
    $region2: #{tpu_custom_call.1} parent=1 // pred_check
      _
    $region3: #{tpu_custom_call.1} parent=1 // pred_check_branch
      %15 = sbr.rel (0) target = $region5
    $region4: #{tpu_custom_call.1} parent=1 // pred_region
      %s17 = ssub.s32 256, 256
      %18 = vsyncadd [#allocation3], %s17
      %s19 = sshll.u32 [#allocation2], 4
      %s20 = int_to_ptr.vmem [resolvable:$true] %s19
      %25 = dma.hbm_to_vmem [thread:$0]  %s0, 256, %s20, [#allocation3], 128, 128, 8
    $region5: #{tpu_custom_call.1} parent=1 // pred_fallthru
      _
    // Predicated region
    $region6: #{tpu_custom_call.1} parent=1 // pred_check
      _
    $region7: #{tpu_custom_call.1} parent=1 // pred_check_branch
      %27 = sbr.rel (0) target = $region9
    $region8: #{tpu_custom_call.1} parent=1 // pred_region
      %s29 = ssub.s32 256, 256
      %30 = vsyncadd [#allocation6], %s29
      %s31 = sshll.u32 [#allocation5], 4
      %s32 = int_to_ptr.vmem [resolvable:$true] %s31
      %37 = dma.hbm_to_vmem [thread:$0]  %s1, 256, %s32, [#allocation6], 128, 128, 8
    $region9: #{tpu_custom_call.1} parent=1 // pred_fallthru
      _
    // Predicated region
    $region10: #{tpu_custom_call.1} parent=1 // pred_check
      _
    $region11: #{tpu_custom_call.1} parent=1 // pred_check_branch
      %39 = sbr.rel (0) target = $region13
    $region12: #{tpu_custom_call.1} parent=1 // pred_region
      %s41 = ssub.s32 1024, 1024
      %42 = vsyncadd [#allocation6], %s41
      %s43 = sshll.u32 [#allocation7], 4
      %s44 = int_to_ptr.vmem [resolvable:$true] %s43
      %49 = dma.hbm_to_vmem [thread:$0]  %s2, 1024, %s44, [#allocation6], 256, 256, 16
    $region13: #{tpu_custom_call.1} parent=1 // pred_fallthru
      _
    // Predicated region
    $region14: #{tpu_custom_call.1} parent=1 // pred_check
      _
    $region15: #{tpu_custom_call.1} parent=1 // pred_check_branch
      %51 = sbr.rel (0) target = $region17
    $region16: #{tpu_custom_call.1} parent=1 // pred_region
      %s53 = ssub.s32 1024, 1024
      %54 = vsyncadd [#allocation9], %s53
      %s55 = sshll.u32 [#allocation8], 4
      %s56 = int_to_ptr.vmem [resolvable:$true] %s55
      %61 = dma.hbm_to_vmem [thread:$0]  %s3, 1024, %s56, [#allocation9], 256, 256, 16
    $region17: #{tpu_custom_call.1} parent=1 // pred_fallthru
      _
    // Predicated region
    $region18: #{tpu_custom_call.1} parent=1 // pred_check
      _
    $region19: #{tpu_custom_call.1} parent=1 // pred_check_branch
      %63 = sbr.rel (0) target = $region21
    $region20: #{tpu_custom_call.1} parent=1 // pred_region
      _
    $region21: #{tpu_custom_call.1} parent=1 // pred_fallthru
      _
    // Predicated region
    $region22: #{tpu_custom_call.1} parent=1 // pred_check
      _
    $region23: #{tpu_custom_call.1} parent=1 // pred_check_branch
      %65 = sbr.rel (0) target = $region25
    $region24: #{tpu_custom_call.1} parent=1 // pred_region
      %66 = dma.done [#allocation3], 256
    $region25: #{tpu_custom_call.1} parent=1 // pred_fallthru
      _
    // Predicated region
    $region26: #{tpu_custom_call.1} parent=1 // pred_check
      _
    $region27: #{tpu_custom_call.1} parent=1 // pred_check_branch
      %68 = sbr.rel (0) target = $region29
    $region28: #{tpu_custom_call.1} parent=1 // pred_region
      %69 = dma.done [#allocation6], 256
    $region29: #{tpu_custom_call.1} parent=1 // pred_fallthru
      _
    // Predicated region
    $region30: #{tpu_custom_call.1} parent=1 // pred_check
      _
    $region31: #{tpu_custom_call.1} parent=1 // pred_check_branch
      %71 = sbr.rel (0) target = $region33
    $region32: #{tpu_custom_call.1} parent=1 // pred_region
      %72 = dma.done [#allocation6], 1024
    $region33: #{tpu_custom_call.1} parent=1 // pred_fallthru
      _
    // Predicated region
    $region34: #{tpu_custom_call.1} parent=1 // pred_check
      _
    $region35: #{tpu_custom_call.1} parent=1 // pred_check_branch
      %74 = sbr.rel (0) target = $region37
    $region36: #{tpu_custom_call.1} parent=1 // pred_region
      %75 = dma.done [#allocation9], 1024
    $region37: #{tpu_custom_call.1} parent=1 // pred_fallthru
      _
    %v76 = vld [vmem:[#allocation2] sm:$0xff]
    %v77 = vld [vmem:[#allocation2 + $0x8] sm:$0xff]
    %v78 = vld [vmem:[#allocation7] sm:$0xff]
    %v79 = vld [vmem:[#allocation7 + $0x8] sm:$0xff]
    %v80 = vld [vmem:[#allocation7 + $0x10] sm:$0xff]
    %v81 = vld [vmem:[#allocation7 + $0x18] sm:$0xff]
    %v82 = vld [vmem:[#allocation7 + $0x20] sm:$0xff]
    %v83 = vld [vmem:[#allocation7 + $0x28] sm:$0xff]
    %v84 = vld [vmem:[#allocation7 + $0x30] sm:$0xff]
    %v85 = vld [vmem:[#allocation7 + $0x38] sm:$0xff]
    %v86 = vld [vmem:[#allocation5] sm:$0xff]
    %v87 = vld [vmem:[#allocation5 + $0x8] sm:$0xff]
    %v88 = vld [vmem:[#allocation8] sm:$0xff]
    %v89 = vld [vmem:[#allocation8 + $0x8] sm:$0xff]
    %v90 = vld [vmem:[#allocation8 + $0x10] sm:$0xff]
    %v91 = vld [vmem:[#allocation8 + $0x18] sm:$0xff]
    %v92 = vld [vmem:[#allocation8 + $0x20] sm:$0xff]
    %v93 = vld [vmem:[#allocation8 + $0x28] sm:$0xff]
    %v94 = vld [vmem:[#allocation8 + $0x30] sm:$0xff]
    %v95 = vld [vmem:[#allocation8 + $0x38] sm:$0xff]
    %vm96 = vcmask 261120
    %v98 = vsel %vm96, %v86, 0
    %v101 = vsel %vm96, %v87, 0
    %103 = vmatprep.subr.mxu0 %v89
    %104 = vmatpush1.msra.mxu0 %v88
    %105 = vmatprep.subr.mxu0 %v91
    %106 = vmatpush1.msra.mxu0 %v90
    %107 = vmatprep.subr.mxu0 %v93
    %108 = vmatpush1.msra.mxu0 %v92
    %109 = vmatprep.subr.mxu0 %v95
    %110 = vmatpush1.msra.mxu0 %v94
    %111 = vmatprep.subr.mxu0 0.0
    %112 = vmatpush1.msra.mxu0 0.0
    %113 = vmatprep.subr.mxu0 0.0
    %114 = vmatpush1.msra.mxu0 0.0
    %115 = vmatprep.subr.mxu0 0.0
    %116 = vmatpush1.msra.mxu0 0.0
    %117 = vmatprep.subr.mxu0 0.0
    %118 = vmatpush1.msra.mxu0 0.0
    %119 = vmatprep.subr.mxu0 0.0
    %120 = vmatpush1.msra.mxu0 0.0
    %121 = vmatprep.subr.mxu0 0.0
    %122 = vmatpush1.msra.mxu0 0.0
    %123 = vmatprep.subr.mxu0 0.0
    %124 = vmatpush1.msra.mxu0 0.0
    %125 = vmatprep.subr.mxu0 0.0
    %126 = vmatpush1.msra.mxu0 0.0
    %127 = vmatprep.subr.mxu0 0.0
    %128 = vmatpush1.msra.mxu0 0.0
    %129 = vmatprep.subr.mxu0 0.0
    %130 = vmatpush1.msra.mxu0 0.0
    %131 = vmatprep.subr.mxu0 0.0
    %132 = vmatpush1.msra.mxu0 0.0
    %133 = vmatprep.subr.mxu0 0.0
    %134 = vmatpush1.msra.mxu0 0.0
    %135 = vmatprep.subr.mxu0 0.0
    %136 = vmatpush1.msra.mxu0 0.0
    %137 = vmatprep.subr.mxu0 0.0
    %138 = vmatpush1.msra.mxu0 0.0
    %139 = vmatprep.subr.mxu0 0.0
    %140 = vmatpush1.msra.mxu0 0.0
    %141 = vmatprep.subr.mxu0 0.0
    %142 = vmatpush1.msra.mxu0 0.0
    %143 = vmatprep.subr.mxu0 0.0
    %144 = vmatpush1.msra.mxu0 0.0
    %145 = vmatprep.subr.mxu0 0.0
    %146 = vmatpush1.msra.mxu0 0.0
    %147 = vmatprep.subr.mxu0 0.0
    %148 = vmatpush1.msra.mxu0 0.0
    %149 = vmatprep.subr.mxu0 0.0
    %150 = vmatpush1.msra.mxu0 0.0
    %151 = vmatprep.subr.mxu0 0.0
    %152 = vmatpush1.msra.mxu0 0.0
    %153 = vmatprep.subr.mxu0 0.0
    %154 = vmatpush1.msra.mxu0 0.0
    %155 = vmatprep.subr.mxu0 0.0
    %156 = vmatpush1.msra.mxu0 0.0
    %157 = vmatprep.subr.mxu0 0.0
    %158 = vmatpush1.msra.mxu0 0.0
    %159 = vmatprep.subr.mxu0 0.0
    %160 = vmatpush1.msra.mxu0 0.0
    %161 = vmatprep.subr.mxu0 0.0
    %162 = vmatpush1.msra.mxu0 0.0
    %163 = vmatprep.subr.mxu0 0.0
    %164 = vmatpush1.msra.mxu0 0.0
    %165 = vmatprep.subr.mxu0 0.0
    %166 = vmatpush1.msra.mxu0 0.0
    %167 = vmatprep.mubr.f32.mxu0 0.0
    %168 = vmatmul.mubr.f32.gmra.mrb[0].mxu0 %v98
    %v169 = vpop.f32.mrb[0].mxu0
    %v170 = vadd.f32 0.0, %v169
    %v171 = vpop.f32.mrb[0].mxu0
    %v172 = vadd.f32 0.0, %v171
    %173 = vmatprep.mubr.f32.mxu0 0.0
    %174 = vmatmul.mubr.f32.gmra.mrb[0].mxu0 %v101
    %v175 = vpop.f32.mrb[0].mxu0
    %v176 = vadd.f32 0.0, %v175
    %v177 = vpop.f32.mrb[0].mxu0
    %v178 = vadd.f32 0.0, %v177
    %179 = vdwg.mxu0
    %v181 = vsel %vm96, %v76, 0
    %v184 = vsel %vm96, %v77, 0
    %186 = vmatprep.subr.mxu0 %v79
    %187 = vmatpush1.msra.mxu0 %v78
    %188 = vmatprep.subr.mxu0 %v81
    %189 = vmatpush1.msra.mxu0 %v80
    %190 = vmatprep.subr.mxu0 %v83
    %191 = vmatpush1.msra.mxu0 %v82
    %192 = vmatprep.subr.mxu0 %v85
    %193 = vmatpush1.msra.mxu0 %v84
    %194 = vmatprep.subr.mxu0 0.0
    %195 = vmatpush1.msra.mxu0 0.0
    %196 = vmatprep.subr.mxu0 0.0
    %197 = vmatpush1.msra.mxu0 0.0
    %198 = vmatprep.subr.mxu0 0.0
    %199 = vmatpush1.msra.mxu0 0.0
    %200 = vmatprep.subr.mxu0 0.0
    %201 = vmatpush1.msra.mxu0 0.0
    %202 = vmatprep.subr.mxu0 0.0
    %203 = vmatpush1.msra.mxu0 0.0
    %204 = vmatprep.subr.mxu0 0.0
    %205 = vmatpush1.msra.mxu0 0.0
    %206 = vmatprep.subr.mxu0 0.0
    %207 = vmatpush1.msra.mxu0 0.0
    %208 = vmatprep.subr.mxu0 0.0
    %209 = vmatpush1.msra.mxu0 0.0
    %210 = vmatprep.subr.mxu0 0.0
    %211 = vmatpush1.msra.mxu0 0.0
    %212 = vmatprep.subr.mxu0 0.0
    %213 = vmatpush1.msra.mxu0 0.0
    %214 = vmatprep.subr.mxu0 0.0
    %215 = vmatpush1.msra.mxu0 0.0
    %216 = vmatprep.subr.mxu0 0.0
    %217 = vmatpush1.msra.mxu0 0.0
    %218 = vmatprep.subr.mxu0 0.0
    %219 = vmatpush1.msra.mxu0 0.0
    %220 = vmatprep.subr.mxu0 0.0
    %221 = vmatpush1.msra.mxu0 0.0
    %222 = vmatprep.subr.mxu0 0.0
    %223 = vmatpush1.msra.mxu0 0.0
    %224 = vmatprep.subr.mxu0 0.0
    %225 = vmatpush1.msra.mxu0 0.0
    %226 = vmatprep.subr.mxu0 0.0
    %227 = vmatpush1.msra.mxu0 0.0
    %228 = vmatprep.subr.mxu0 0.0
    %229 = vmatpush1.msra.mxu0 0.0
    %230 = vmatprep.subr.mxu0 0.0
    %231 = vmatpush1.msra.mxu0 0.0
    %232 = vmatprep.subr.mxu0 0.0
    %233 = vmatpush1.msra.mxu0 0.0
    %234 = vmatprep.subr.mxu0 0.0
    %235 = vmatpush1.msra.mxu0 0.0
    %236 = vmatprep.subr.mxu0 0.0
    %237 = vmatpush1.msra.mxu0 0.0
    %238 = vmatprep.subr.mxu0 0.0
    %239 = vmatpush1.msra.mxu0 0.0
    %240 = vmatprep.subr.mxu0 0.0
    %241 = vmatpush1.msra.mxu0 0.0
    %242 = vmatprep.subr.mxu0 0.0
    %243 = vmatpush1.msra.mxu0 0.0
    %244 = vmatprep.subr.mxu0 0.0
    %245 = vmatpush1.msra.mxu0 0.0
    %246 = vmatprep.subr.mxu0 0.0
    %247 = vmatpush1.msra.mxu0 0.0
    %248 = vmatprep.subr.mxu0 0.0
    %249 = vmatpush1.msra.mxu0 0.0
    %250 = vmatprep.mubr.f32.mxu0 0.0
    %251 = vmatmul.mubr.f32.gmra.mrb[0].mxu0 %v181
    %v252 = vpop.f32.mrb[0].mxu0
    %v253 = vadd.f32 %v170, %v252
    %v254 = vpop.f32.mrb[0].mxu0
    %v255 = vadd.f32 %v172, %v254
    %256 = vmatprep.mubr.f32.mxu0 0.0
    %257 = vmatmul.mubr.f32.gmra.mrb[0].mxu0 %v184
    %v258 = vpop.f32.mrb[0].mxu0
    %v259 = vadd.f32 %v176, %v258
    %v260 = vpop.f32.mrb[0].mxu0
    %v261 = vadd.f32 %v178, %v260
    %262 = vdwg.mxu0
    %v263 = vld [vmem:[%s4] sm:$0x3]
    %v265 = vlaneseq
    %v266 = vshrl.u32 %v265, 7
    %v267 = vsub.s32 0, %v266
    %v268 = vrot.slane %v263, %v267
    %v269 = vlaneseq
    %v270 = vshrl.u32 %v269, 7
    %v271 = vsub.s32 1, %v270
    %v272 = vrot.slane %v263, %v271
    %v275 = vadd.f32 %v253, %v268
    %v276 = vadd.f32 %v255, %v272
    %v277 = vadd.f32 %v259, %v268
    %v278 = vadd.f32 %v261, %v272
    %v279 = vxor.u32 %v276, 2147483648
    %v280 = vxor.u32 %v278, 2147483648
    %v281 = vmul.f32 %v279, 1.442695
    %v282 = vpow.pop %v281
    %v283 = vmul.f32 %v280, 1.442695
    %v284 = vpow.pop %v283
    %v285 = vadd.f32 %v282, 1.0
    %v286 = vadd.f32 %v284, 1.0
    %v287 = vrcp.pop %v285
    %v288 = vmul.f32 1.0, %v287
    %v289 = vrcp.pop %v286
    %v290 = vmul.f32 1.0, %v289
    %v291 = vmul.f32 %v275, %v288
    %v292 = vmul.f32 %v277, %v290
    %293 = vst [vmem:[#allocation10] sm:$0xff] %v291
    %294 = vst [vmem:[#allocation10 + $0x8] sm:$0xff] %v292
    // Predicated region
    $region38: #{tpu_custom_call.1} parent=1 // pred_check
      _
    $region39: #{tpu_custom_call.1} parent=1 // pred_check_branch
      %296 = sbr.rel (0) target = $region41
    $region40: #{tpu_custom_call.1} parent=1 // pred_region
      %s298 = ssub.s32 256, 256
      %299 = vsyncadd [#allocation4], %s298
      %s300 = sshll.u32 [#allocation10], 4
      %s301 = int_to_ptr.vmem [resolvable:$true] %s300
      %306 = dma.vmem_to_hbm [thread:$0]  %s301, 256, %s5, [#allocation4], 128, 128, 8
    $region41: #{tpu_custom_call.1} parent=1 // pred_fallthru
      _
    // Predicated region
    $region42: #{tpu_custom_call.1} parent=1 // pred_check
      _
    $region43: #{tpu_custom_call.1} parent=1 // pred_check_branch
      %308 = sbr.rel (0) target = $region45
    $region44: #{tpu_custom_call.1} parent=1 // pred_region
      %309 = dma.done [#allocation4], 256
    $region45: #{tpu_custom_call.1} parent=1 // pred_fallthru
      _
    %310 = vsyncpa [#allocation3], 1
    %311 = vsyncpa [#allocation6], 1
    %312 = vsyncpa [#allocation9], 1
    %313 = vsyncpa [#allocation4], 1

</llo_original>
